<compile_context>
chip_gen: v6e
topology: v6e:2x2x1
jax: 0.10.0
libtpu: 0.0.40
codegen_flags: <defaults>
</compile_context>

<pallas_src>
import functools

import jax
import jax.numpy as jnp
from jax import lax
from jax.experimental import pallas as pl
from jax.experimental.pallas import tpu as pltpu

LANES = 128
SUBLANES = 8


def _cdiv(a, b):
    return (a + b - 1) // b


def _round_up(a, b):
    return _cdiv(a, b) * b


def _default_core_splits():
    """2 on multi-TensorCore chips (v7x / v4 / v5p), 1 on single-TC v5e / v6e."""
    try:
        kind = jax.devices()[0].device_kind.lower()
    except Exception:
        return 1
    if "lite" in kind or "v5e" in kind or "v6" in kind:
        return 1
    if "v7" in kind or "v4" in kind or "v5p" in kind:
        return 2
    return 1


def _sq_err_kernel(recon_ref, x_ref, o_ref, acc_ref, *,
                   chunk, num_chunks, tile_rows, tiles_per_core, rows,
                   need_mask):
    """Accumulates sum((recon - x)^2) over one (tile_rows, 128) row tile."""
    c = pl.program_id(0)          # core-split axis ("parallel")
    i = pl.program_id(1)          # row-tile axis ("arbitrary")

    @pl.when(i == 0)
    def _init():
        acc_ref[...] = jnp.zeros_like(acc_ref)

    if need_mask:
        # Valid rows in this tile (<= 0 for clamped fully-out-of-range tiles,
        # >= tile_rows for full tiles).  Iota is hoisted out of the loop.
        valid = rows - (c * tiles_per_core + i) * tile_rows
        row_iota = lax.broadcasted_iota(jnp.int32, (chunk, LANES), 0)

    def body(k, carry):
        r0 = pl.multiple_of(k * chunk, chunk)
        a = recon_ref[pl.ds(r0, chunk), :].astype(jnp.float32)
        b = x_ref[pl.ds(r0, chunk), :].astype(jnp.float32)
        d = a - b
        if need_mask:
            d = jnp.where(row_iota < valid - r0, d, jnp.float32(0.0))
        return carry + d * d

    unroll = True if num_chunks <= 16 else 8
    partial = lax.fori_loop(0, num_chunks, body,
                            jnp.zeros((chunk, LANES), jnp.float32),
                            unroll=unroll)
    acc_ref[...] += partial

    @pl.when(i == pl.num_programs(1) - 1)
    def _finalize():
        # Lane-dense store of the per-core partial; the cross-lane reduction
        # of this tiny block happens in the wrapper.
        o_ref[...] = acc_ref[...].reshape(1, chunk, LANES)


def _sq_err_sum(recon2d, x2d, core_splits, target_block_bytes):
    """sum((recon2d - x2d)^2) over a lane-dense (rows, 128) slab."""
    rows = recon2d.shape[0]
    itemsize = jnp.dtype(recon2d.dtype).itemsize

    # ---- tile sizing by bytes (~1 MiB per input block), multiple of 32 ----
    target_rows = max(32, (target_block_bytes // (LANES * itemsize)) // 32 * 32)
    tile_rows = min(target_rows, _round_up(rows, SUBLANES))
    if tile_rows % 32 == 0:
        chunk = 32
    elif tile_rows % 16 == 0:
        chunk = 16
    else:
        chunk = 8
    num_chunks = tile_rows // chunk

    total_tiles = _cdiv(rows, tile_rows)
    splits = max(1, min(core_splits, total_tiles))
    tiles_per_core = _cdiv(total_tiles, splits)
    need_mask = (total_tiles * tile_rows != rows
                 or splits * tiles_per_core != total_tiles)

    last_block = total_tiles - 1
    if splits * tiles_per_core == total_tiles:
        def in_map(c, i):
            return (c * tiles_per_core + i, 0)
    else:
        # Clamp fully-out-of-range tiles onto the last real tile; their
        # contribution is zeroed by the in-kernel row mask.
        def in_map(c, i):
            return (jnp.minimum(c * tiles_per_core + i, last_block), 0)

    kernel = functools.partial(
        _sq_err_kernel, chunk=chunk, num_chunks=num_chunks,
        tile_rows=tile_rows, tiles_per_core=tiles_per_core, rows=rows,
        need_mask=need_mask)

    cost = pl.CostEstimate(
        flops=3 * rows * LANES,
        transcendentals=0,
        bytes_accessed=2 * rows * LANES * itemsize
        + splits * chunk * LANES * 4)

    partials = pl.pallas_call(
        kernel,
        out_shape=jax.ShapeDtypeStruct((splits, chunk, LANES), jnp.float32),
        grid_spec=pltpu.PrefetchScalarGridSpec(
            num_scalar_prefetch=0,
            grid=(splits, tiles_per_core),
            in_specs=[
                pl.BlockSpec((tile_rows, LANES), in_map),
                pl.BlockSpec((tile_rows, LANES), in_map),
            ],
            out_specs=pl.BlockSpec((1, chunk, LANES), lambda c, i: (c, 0, 0)),
            scratch_shapes=[pltpu.VMEM((chunk, LANES), jnp.float32)],
        ),
        compiler_params=pltpu.CompilerParams(
            dimension_semantics=("parallel", "arbitrary"),
            # Working set ~= 2 inputs x 2 buffers x ~1 MiB + tiny acc/out;
            # 32 MiB is safe on every generation incl. v7x's 64 MiB/TC VMEM.
            vmem_limit_bytes=32 * 1024 * 1024,
        ),
        cost_estimate=cost,
    )(recon2d, x2d)

    # Tiny (splits, chunk, 128) partials -> scalar (cheap XLA reduce).
    return jnp.sum(partials)


@functools.partial(jax.jit, static_argnums=(3, 4))
def _mem_loss_impl(recon, x, att, core_splits, target_block_bytes):
    total = recon.size
    rows = total // LANES
    main = rows * LANES

    recon_flat = recon.reshape(-1)     # free reshape (contiguous)
    x_flat = x.reshape(-1)

    if rows > 0:
        if main == total:
            recon2d = recon_flat.reshape(rows, LANES)    # free reshape
            x2d = x_flat.reshape(rows, LANES)            # free reshape
        else:
            # Rare ragged case (total % 128 != 0): one contiguous slice copy.
            recon2d = recon_flat[:main].reshape(rows, LANES)
            x2d = x_flat[:main].reshape(rows, LANES)
        recon_error = _sq_err_sum(recon2d, x2d, core_splits,
                                  target_block_bytes)
    else:
        recon_error = jnp.float32(0.0)

    if main != total:
        # Sub-128-element tail handled in plain JAX (negligible work).
        dt = (recon_flat[main:].astype(jnp.float32)
              - x_flat[main:].astype(jnp.float32))
        recon_error = recon_error + jnp.sum(dt * dt)

    # Tiny (B, M) attention-entropy term in plain JAX (per perf review).
    attf = att.astype(jnp.float32)
    weight_error = jnp.sum(attf * jnp.log(attf + jnp.float32(1e-5)))
    return recon_error - weight_error * jnp.float32(2e-4)


def mem_loss(recon, x, att, *, core_splits=None, target_block_bytes=1 << 20):
    """Pallas implementation of MemLoss.forward. Returns a scalar float32."""
    assert recon.shape == x.shape, "recon and x must have identical shapes"
    if core_splits is None:
        core_splits = _default_core_splits()
    return _mem_loss_impl(recon, x, att, int(core_splits),
                          int(target_block_bytes))


def mem_loss_ref(recon, x, att):
    """Pure-JAX reference (mirrors the PyTorch module)."""
    recon_error = jnp.sum((recon.astype(jnp.float32)
                           - x.astype(jnp.float32)) ** 2)
    weight_error = jnp.sum(att.astype(jnp.float32)
                           * jnp.log(att.astype(jnp.float32) + 1e-5))
    return recon_error - weight_error * 0.0002


if __name__ == "__main__":
    key = jax.random.PRNGKey(0)
    k1, k2, k3 = jax.random.split(key, 3)

    # Shapes consistent with the module's forward:
    #   recon, x: (B, C, H, W) reconstruction vs. input
    #   att:      (B, M) memory-attention weights (non-negative, row-softmaxed)
    B, C, H, W = 2, 4, 16, 16
    M = 32

    x = jax.random.normal(k1, (B, C, H, W), dtype=jnp.float32)
    recon = x + 0.1 * jax.random.normal(k2, (B, C, H, W), dtype=jnp.float32)
    att = jax.nn.softmax(jax.random.normal(k3, (B, M), dtype=jnp.float32),
                         axis=-1)

    out = jax.block_until_ready(mem_loss(recon, x, att))
    ref = jax.block_until_ready(mem_loss_ref(recon, x, att))
    assert jnp.allclose(out, ref, rtol=1e-5, atol=1e-4), (out, ref)

    # Extra coverage: multi-tile path with a partial (row-masked) last tile.
    x2 = jax.random.normal(k1, (2, 4, 5, 128), dtype=jnp.float32)   # rows = 40
    r2 = x2 + 0.05 * jax.random.normal(k2, (2, 4, 5, 128), dtype=jnp.float32)
    out2 = jax.block_until_ready(mem_loss(r2, x2, att,
                                          target_block_bytes=16384))
    ref2 = jax.block_until_ready(mem_loss_ref(r2, x2, att))
    assert jnp.allclose(out2, ref2, rtol=1e-5, atol=1e-4), (out2, ref2)

    # Extra coverage: ragged tail (total % 128 != 0) + bf16 inputs.
    xb = jax.random.normal(k1, (2, 537), dtype=jnp.float32).astype(jnp.bfloat16)
    rb = (xb.astype(jnp.float32)
          + 0.1 * jax.random.normal(k2, (2, 537), dtype=jnp.float32)
          ).astype(jnp.bfloat16)
    out3 = jax.block_until_ready(mem_loss(rb, xb, att))
    ref3 = jax.block_until_ready(mem_loss_ref(rb, xb, att))
    assert jnp.allclose(out3, ref3, rtol=1e-4, atol=1e-3), (out3, ref3)

    print("KERNEL_OK")
</pallas_src>

<mosaic_0001>
module attributes {stable_mosaic.version = 11 : i64} {
  func.func @_sq_err_kernel(%arg0: i32, %arg1: i32, %arg2: memref<16x128xf32, #tpu.memory_space<vmem>>, %arg3: memref<16x128xf32, #tpu.memory_space<vmem>>, %arg4: memref<1x16x128xf32, #tpu.memory_space<vmem>>, %arg5: memref<16x128xf32, #tpu.memory_space<vmem>>) attributes {dimension_semantics = [#tpu.dimension_semantics<parallel>, #tpu.dimension_semantics<arbitrary>], iteration_bounds = array<i64: 1, 1>, scalar_prefetch = 0 : i64, scratch_operands = 1 : i64, tpu.core_type = #tpu.core_type<tc>, window_params = [{transform_indices = @transform_0, window_bounds = array<i64: 16, 128>}, {transform_indices = @transform_1, window_bounds = array<i64: 16, 128>}, {transform_indices = @transform_2, window_bounds = array<i64: 1, 16, 128>}]} {
    %c0_i32 = arith.constant 0 : i32
    %0 = arith.cmpi eq, %arg1, %c0_i32 : i32
    %1 = arith.extui %0 : i1 to i32
    %c0_i32_0 = arith.constant 0 : i32
    %2 = arith.cmpi ne, %1, %c0_i32_0 : i32
    scf.if %2 {
      %cst_9 = arith.constant 0.000000e+00 : f32
      %19 = vector.broadcast %cst_9 : f32 to vector<16x128xf32>
      %c0_10 = arith.constant 0 : index
      %c0_11 = arith.constant 0 : index
      %20 = vector.load %arg5[%c0_10, %c0_11] : memref<16x128xf32, #tpu.memory_space<vmem>>, vector<16x128xf32>
      tpu.vector_store %arg5[%c0_10, %c0_11], %19 {strides = array<i32>} : memref<16x128xf32, #tpu.memory_space<vmem>>, vector<16x128xf32>,
    } else {
    }
    %cst = arith.constant 0.000000e+00 : f32
    %3 = vector.broadcast %cst : f32 to vector<16x128xf32>
    %c0_i32_1 = arith.constant 0 : i32
    %c16_i32 = arith.constant 16 : i32
    %4 = arith.muli %c0_i32_1, %c16_i32 : i32
    %5 = tpu.assume_multiple %4, 16 : i32
    %6 = arith.index_cast %5 : i32 to index
    %c0 = arith.constant 0 : index
    %7 = vector.load %arg2[%6, %c0] : memref<16x128xf32, #tpu.memory_space<vmem>>, vector<16x128xf32>
    %8 = arith.index_cast %5 : i32 to index
    %c0_2 = arith.constant 0 : index
    %9 = vector.load %arg3[%8, %c0_2] : memref<16x128xf32, #tpu.memory_space<vmem>>, vector<16x128xf32>
    %10 = arith.subf %7, %9 : vector<16x128xf32>
    %11 = arith.mulf %10, %10 : vector<16x128xf32>
    %12 = arith.addf %3, %11 : vector<16x128xf32>
    %c1_i32 = arith.constant 1 : i32
    %c0_3 = arith.constant 0 : index
    %c0_4 = arith.constant 0 : index
    %13 = vector.load %arg5[%c0_3, %c0_4] : memref<16x128xf32, #tpu.memory_space<vmem>>, vector<16x128xf32>
    %14 = arith.addf %13, %12 : vector<16x128xf32>
    %c0_5 = arith.constant 0 : index
    %c0_6 = arith.constant 0 : index
    %15 = vector.load %arg5[%c0_5, %c0_6] : memref<16x128xf32, #tpu.memory_space<vmem>>, vector<16x128xf32>
    tpu.vector_store %arg5[%c0_5, %c0_6], %14 {strides = array<i32>} : memref<16x128xf32, #tpu.memory_space<vmem>>, vector<16x128xf32>,
    %c0_i32_7 = arith.constant 0 : i32
    %16 = arith.cmpi eq, %arg1, %c0_i32_7 : i32
    %17 = arith.extui %16 : i1 to i32
    %c0_i32_8 = arith.constant 0 : i32
    %18 = arith.cmpi ne, %17, %c0_i32_8 : i32
    scf.if %18 {
      %c0_9 = arith.constant 0 : index
      %c0_10 = arith.constant 0 : index
      %19 = vector.load %arg5[%c0_9, %c0_10] : memref<16x128xf32, #tpu.memory_space<vmem>>, vector<16x128xf32>
      %20 = vector.shape_cast %19 : vector<16x128xf32> to vector<1x16x128xf32>
      %c0_11 = arith.constant 0 : index
      %c0_12 = arith.constant 0 : index
      %c0_13 = arith.constant 0 : index
      %21 = vector.load %arg4[%c0_11, %c0_12, %c0_13] : memref<1x16x128xf32, #tpu.memory_space<vmem>>, vector<1x16x128xf32>
      tpu.vector_store %arg4[%c0_11, %c0_12, %c0_13], %20 {strides = array<i32>} : memref<1x16x128xf32, #tpu.memory_space<vmem>>, vector<1x16x128xf32>,
    } else {
    }
    return
  }
  func.func @transform_0(%arg0: i32, %arg1: i32) -> (i32, i32) {
    %c1_i32 = arith.constant 1 : i32
    %0 = arith.muli %arg0, %c1_i32 : i32
    %1 = arith.addi %0, %arg1 : i32
    %c0_i32 = arith.constant 0 : i32
    %c0_i32_0 = arith.constant 0 : i32
    return %1, %c0_i32 : i32, i32
  }
  func.func @transform_1(%arg0: i32, %arg1: i32) -> (i32, i32) {
    %c1_i32 = arith.constant 1 : i32
    %0 = arith.muli %arg0, %c1_i32 : i32
    %1 = arith.addi %0, %arg1 : i32
    %c0_i32 = arith.constant 0 : i32
    %c0_i32_0 = arith.constant 0 : i32
    return %1, %c0_i32 : i32, i32
  }
  func.func @transform_2(%arg0: i32, %arg1: i32) -> (i32, i32, i32) {
    %c0_i32 = arith.constant 0 : i32
    %c0_i32_0 = arith.constant 0 : i32
    %c0_i32_1 = arith.constant 0 : i32
    return %arg0, %c0_i32, %c0_i32_0 : i32, i32, i32
  }
}

</mosaic_0001>

<llo_original>
// kernel: _mem_loss_impl.1
$region0: #{_mem_loss_impl.1}
  #allocation0 [shape = 'u32[]', space=smem, size = 0x4, offset = 0x4, fixed_abs, tag = 'smem constant byte address 0x4 - core index']
  #allocation1 [shape = 'u32[144,128]{1,0:T(1,128)}', space=vmem, size = 0x12000, scoped, tag = 'internal scratch']
  #allocation2 [shape = 'f32[16,128]{1,0:T(8,128)}', space=vmem, size = 0x2000, scoped, tag = 'scratch operand']
  %s0 = inlined_call_operand.vmem [shape: f32[16,128], index: 0, kind: input, shape index: {}]
  %s1 = inlined_call_operand.vmem [shape: f32[16,128], index: 1, kind: input, shape index: {}]
  %s2 = inlined_call_operand.vmem [shape: f32[1,16,128], index: 2, kind: output, shape index: {}]
  %s3 = sld [smem:[#allocation0]]
  $region26: #{_mem_loss_impl.1} parent=0
    _
  %s5 = ssub.s32 1, %s3
  %s6 = scalar_select 0, %s5, %s3
  // Predicated region
  $region2: #{_mem_loss_impl.1} parent=0 // pred_check
    _
  $region3: #{_mem_loss_impl.1} parent=0 // pred_check_branch
    %8 = sbr.rel (0) target = $region5
  $region4: #{_mem_loss_impl.1} parent=0 // pred_region
    %s9 = sadd.s32 0, 0
    %s10 = smul.u32 2, %s9
    %p11 = scmp.lt.s32.totalorder %s10, 1
    %s12 = scalar_select %p11, %s10, 1
    %s13 = smul.addr %s12, 8
    %s14 = scalar_lea.vmem %s0, %s13
    %s15 = sadd.s32 0, 0
    %s16 = smul.u32 2, %s15
  $region5: #{_mem_loss_impl.1} parent=0 // pred_fallthru
    _
  // Predicated region
  $region6: #{_mem_loss_impl.1} parent=0 // pred_check
    _
  $region7: #{_mem_loss_impl.1} parent=0 // pred_check_branch
    %18 = sbr.rel (0) target = $region9
  $region8: #{_mem_loss_impl.1} parent=0 // pred_region
    %s19 = sadd.s32 0, 0
    %s20 = smul.u32 2, %s19
    %p21 = scmp.lt.s32.totalorder %s20, 1
    %s22 = scalar_select %p21, %s20, 1
    %s23 = smul.addr %s22, 8
    %s24 = scalar_lea.vmem %s1, %s23
    %s25 = sadd.s32 0, 0
    %s26 = smul.u32 2, %s25
  $region9: #{_mem_loss_impl.1} parent=0 // pred_fallthru
    _
  %s27 = sadd.s32 0, 0
  %s28 = smul.u32 2, %s27
  %p29 = scmp.lt.s32.totalorder %s28, 1
  %s30 = scalar_select %p29, %s28, 1
  %s31 = smul.addr %s30, 8
  %s32 = scalar_lea.vmem %s0, %s31
  %s33 = sadd.s32 0, 0
  %s34 = smul.u32 2, %s33
  %p35 = scmp.lt.s32.totalorder %s34, 1
  %s36 = scalar_select %p35, %s34, 1
  %s37 = smul.addr %s36, 8
  %s38 = scalar_lea.vmem %s1, %s37
  %s39 = sadd.s32 0, 0
  %s40 = smul.u32 2, %s39
  %p41 = scmp.lt.s32.totalorder %s40, 1
  %s42 = scalar_select %p41, %s40, 1
  %s43 = smul.addr %s42, 8
  %s44 = scalar_lea.vmem %s0, %s43
  %s45 = sadd.s32 0, 0
  %s46 = smul.u32 2, %s45
  %s47 = sadd.s32 0, 0
  %s48 = smul.u32 2, %s47
  %p49 = scmp.lt.s32.totalorder %s48, 1
  %s50 = scalar_select %p49, %s48, 1
  %s51 = smul.addr %s50, 8
  %s52 = scalar_lea.vmem %s1, %s51
  %s53 = sadd.s32 0, 0
  %s54 = smul.u32 2, %s53
  %p55 = scmp.eq.s32.totalorder 0, 0
  // Predicated region
  $region10: #{_mem_loss_impl.1} parent=0 // pred_check
    %p56 = pneg %p55
  $region11: #{_mem_loss_impl.1} parent=0 // pred_check_branch
    %58 = sbr.rel (%p56) target = $region13
  $region12: #{_mem_loss_impl.1} parent=0 // pred_region
    %59 = vst [vmem:[#allocation2] sm:$0xff] 0.0
    %60 = vst [vmem:[#allocation2 + $0x8] sm:$0xff] 0.0
  $region13: #{_mem_loss_impl.1} parent=0 // pred_fallthru
    _
  %v61 = vld [vmem:[%s44] sm:$0xff]
  %v62 = vld [vmem:[%s44 + $0x8] sm:$0xff]
  %v63 = vld [vmem:[%s52] sm:$0xff]
  %v64 = vld [vmem:[%s52 + $0x8] sm:$0xff]
  %v65 = vsub.f32 %v61, %v63
  %v66 = vsub.f32 %v62, %v64
  %v67 = vmul.f32 %v65, %v65
  %v68 = vmul.f32 %v66, %v66
  %v69 = vadd.f32 %v67, 0.0
  %v70 = vadd.f32 %v68, 0.0
  %v71 = vld [vmem:[#allocation2] sm:$0xff]
  %v72 = vld [vmem:[#allocation2 + $0x8] sm:$0xff]
  %v73 = vadd.f32 %v71, %v69
  %v74 = vadd.f32 %v72, %v70
  %75 = vst [vmem:[#allocation2] sm:$0xff] %v73
  %76 = vst [vmem:[#allocation2 + $0x8] sm:$0xff] %v74
  // Predicated region
  $region14: #{_mem_loss_impl.1} parent=0 // pred_check
    %p77 = pneg %p55
  $region15: #{_mem_loss_impl.1} parent=0 // pred_check_branch
    %79 = sbr.rel (%p77) target = $region17
  $region16: #{_mem_loss_impl.1} parent=0 // pred_region
    %v80 = vld [vmem:[#allocation2] sm:$0xff]
    %v81 = vld [vmem:[#allocation2 + $0x8] sm:$0xff]
    %82 = vst [vmem:[%s2] sm:$0xff] %v80
    %83 = vst [vmem:[%s2 + $0x8] sm:$0xff] %v81
  $region17: #{_mem_loss_impl.1} parent=0 // pred_fallthru
    _
  // Predicated region
  $region18: #{_mem_loss_impl.1} parent=0 // pred_check
    _
  $region19: #{_mem_loss_impl.1} parent=0 // pred_check_branch
    %85 = sbr.rel (0) target = $region21
  $region20: #{_mem_loss_impl.1} parent=0 // pred_region
    _
  $region21: #{_mem_loss_impl.1} parent=0 // pred_fallthru
    _
  // Predicated region
  $region22: #{_mem_loss_impl.1} parent=0 // pred_check
    _
  $region23: #{_mem_loss_impl.1} parent=0 // pred_check_branch
    %87 = sbr.rel (0) target = $region25
  $region24: #{_mem_loss_impl.1} parent=0 // pred_region
    _
  $region25: #{_mem_loss_impl.1} parent=0 // pred_fallthru
    _

</llo_original>
